<compile_context>
chip_gen: v7x
topology: tpu7x:2x2x1
jax: 0.10.0
libtpu: 0.0.40
codegen_flags: <defaults>
</compile_context>

<pallas_src>
import functools

import numpy as np
import jax
import jax.numpy as jnp
from jax.experimental import pallas as pl
from jax.experimental.pallas import tpu as pltpu

_INV_LN10 = float(1.0 / np.log(10.0))


def _round_up(x, m):
    return ((x + m - 1) // m) * m


# ----------------------------------------------------------------------------- kernel
def _lsd_kernel(frames_ref, basis_ref, out_ref, *, f_pad, inv_n_freq):
    # frames_ref: (2, tile, n_fft)  -- y_hat frames stacked over y frames
    # basis_ref : (n_fft, 2*f_pad)  -- Hann-windowed fused [cos | -sin] real-DFT basis
    _, tile, n_fft = frames_ref.shape
    fr = frames_ref[...].reshape(2 * tile, n_fft)   # merge leading dim (sublane-aligned)

    # One MXU matmul per grid step covers BOTH signals (M = 2*tile), f32 accumulation.
    x = jnp.dot(fr, basis_ref[...], preferred_element_type=jnp.float32)  # (2*tile, 2*f_pad)

    re = x[:, :f_pad]
    im = x[:, f_pad:]
    p = jnp.maximum(re * re + im * im, 1e-8)        # clamped power spectra, both signals
    ph = p[:tile]                                   # |Y_hat|^2
    py = p[tile:]                                   # |Y|^2

    # log10(ph) - log10(py) == log(ph / py) / ln(10): one transcendental per element.
    d = jnp.log(ph / py) * _INV_LN10

    # Padded frequency bins have ph == py == 1e-8 -> d == 0, so the plain sum is exact;
    # normalize by the TRUE number of frequency bins.
    mse = jnp.sum(d * d, axis=-1, keepdims=True) * inv_n_freq
    out_ref[...] = jnp.sqrt(mse)                    # per-frame LSD, (tile, 1)


# ------------------------------------------------------------------------------- glue
def _frame_pair(y_hat, y, n_fft, hop_length, compute_dtype):
    """torch.stft-style framing (center=True, reflect pad) of both signals at once.

    Returns ((2, n_frames, n_fft) frames in compute_dtype, n_frames).  The cast happens
    on the 1-D padded signal, so the 4x-redundant frame matrix is never touched in f32,
    and when n_fft % hop == 0 the frames are built from contiguous shifted views (no
    gather / index-matrix traffic).
    """
    T = y_hat.shape[0]
    pad = n_fft // 2
    assert T > pad, "signal too short for torch.stft's center=True reflect padding"
    n_frames = 1 + T // hop_length

    ys = jnp.stack([y_hat, y], axis=0)                                    # (2, T), cheap
    xp = jnp.pad(ys, ((0, 0), (pad, pad)), mode="reflect").astype(compute_dtype)

    if n_fft % hop_length == 0:
        r = n_fft // hop_length
        n_blocks = n_frames + r - 1
        blocks = xp[:, : n_blocks * hop_length].reshape(2, n_blocks, hop_length)
        frames = jnp.concatenate(
            [blocks[:, j:j + n_frames, :] for j in range(r)], axis=2)
    else:
        idx = hop_length * jnp.arange(n_frames)[:, None] + jnp.arange(n_fft)[None, :]
        frames = xp[:, idx]
    return frames, n_frames                                               # (2, N, n_fft)


def _vmem_budgets():
    """(tile-sizing budget, vmem_limit_bytes) derived from the chip's physical VMEM."""
    default_cap = 64 * 1024 * 1024                   # conservative (v7x per-TC VMEM)
    try:
        info = pltpu.get_tpu_info()
        cap = int(getattr(info, "vmem_capacity_bytes", default_cap))
    except Exception:  # pragma: no cover - hardware query unavailable
        cap = default_cap
    return int(cap * 0.55), int(cap * 0.80)


def _auto_frame_tile(n_fft, f_pad, itemsize, n_frames, budget_bytes):
    """Largest frame tile whose estimated VMEM footprint fits the budget."""
    basis_bytes = n_fft * (2 * f_pad) * itemsize               # single-buffered constant
    per_row = (4 * n_fft * itemsize                            # fused frame block, double-buffered
               + 2 * (2 * f_pad) * 4                           # f32 spectra (both signals)
               + 2 * f_pad * 4                                 # clamped powers (both signals)
               + f_pad * 4)                                    # f32 log-ratio intermediate
    # Cap at ceil(n_frames / 2) so the grid has >= 2 steps -> both v7x TCs get work.
    cap = max(8, _round_up(-(-n_frames // 2), 8))
    for tile in sorted({1024, 768, 512, 384, 256, 128, 64, 32, 16, 8, cap}, reverse=True):
        if tile <= cap and basis_bytes + tile * per_row <= budget_bytes:
            return tile
    return 8


def lsd_pallas(y_hat, y, n_fft=2048, hop_length=512, ratio=None,
               frame_tile=None, compute_dtype=jnp.bfloat16):
    """LSD via a Pallas real-DFT matmul kernel.

    compute_dtype=bfloat16 (MXU inputs; f32 accumulation) is the production path.
    compute_dtype=float32 is kept for validation-grade numbers only -- the f32 MXU
    path is several times slower, especially on v5e.
    """
    assert y_hat.shape == y.shape and y_hat.ndim == 1
    y_hat = y_hat.astype(jnp.float32)
    y = y.astype(jnp.float32)

    n_freq = n_fft // 2 + 1
    if ratio is not None:
        n_freq = int((n_fft // 2 + 1) * ratio)       # Y[:index] slicing of the freq axis
    f_pad = _round_up(n_freq, 128)                   # lane-dense frequency axis

    # Host-side constants: periodic Hann window folded into a fused [cos | -sin]
    # real-DFT basis, zero-padded along frequency to a multiple of 128 lanes.
    n = np.arange(n_fft, dtype=np.float64)
    k = np.arange(n_freq, dtype=np.float64)
    win = 0.5 - 0.5 * np.cos(2.0 * np.pi * n / n_fft)          # periodic Hann
    ang = 2.0 * np.pi * np.outer(n, k) / n_fft
    basis_np = np.zeros((n_fft, 2 * f_pad), dtype=np.float64)
    basis_np[:, :n_freq] = np.cos(ang) * win[:, None]
    basis_np[:, f_pad:f_pad + n_freq] = -np.sin(ang) * win[:, None]
    basis = jnp.asarray(basis_np, dtype=compute_dtype)

    frames, n_frames = _frame_pair(y_hat, y, n_fft, hop_length, compute_dtype)

    itemsize = jnp.dtype(compute_dtype).itemsize
    tile_budget, vmem_limit = _vmem_budgets()
    if frame_tile is None:
        frame_tile = _auto_frame_tile(n_fft, f_pad, itemsize, n_frames, tile_budget)
    frame_tile = max(8, _round_up(int(frame_tile), 8))

    # Pad the frame axis to a tile multiple; padded (all-zero) frames yield per-frame
    # LSD of exactly 0 and are excluded from the final mean below.
    n_pad = _round_up(n_frames, frame_tile)
    if n_pad != n_frames:
        frames = jnp.pad(frames, ((0, 0), (0, n_pad - n_frames), (0, 0)))

    grid = (n_pad // frame_tile,)
    kernel = functools.partial(_lsd_kernel, f_pad=f_pad, inv_n_freq=float(1.0 / n_freq))

    per_frame = pl.pallas_call(
        kernel,
        out_shape=jax.ShapeDtypeStruct((n_pad, 1), jnp.float32),
        grid_spec=pltpu.PrefetchScalarGridSpec(
            num_scalar_prefetch=0,
            grid=grid,
            in_specs=[
                # Fused frame stream: one DMA stream (double-buffered) carries both signals.
                pl.BlockSpec((2, frame_tile, n_fft), lambda i: (0, i, 0)),
                # Constant basis: block index is (0, 0) every step -> DMA'd exactly once,
                # and single-buffered so it occupies one basis-sized VMEM slab, not two.
                pl.BlockSpec((n_fft, 2 * f_pad), lambda i: (0, 0),
                             pipeline_mode=pl.Buffered(1)),
            ],
            out_specs=pl.BlockSpec((frame_tile, 1), lambda i: (i, 0)),
        ),
        compiler_params=pltpu.CompilerParams(
            dimension_semantics=("parallel",),
            vmem_limit_bytes=vmem_limit,
        ),
    )(frames, basis)

    # Final mean over the TRUE frame count (padded frames contribute exactly 0).
    return jnp.sum(per_frame[:n_frames, 0]) / np.float32(n_frames)


# --------------------------------------------------------------------------- reference
def _frame_signal_gather(x, n_fft, hop_length):
    """Gather-based framing (independent of the blocked path), for the reference only."""
    pad = n_fft // 2
    xp = jnp.pad(x, (pad, pad), mode="reflect")
    n_frames = 1 + x.shape[0] // hop_length
    idx = hop_length * jnp.arange(n_frames)[:, None] + jnp.arange(n_fft)[None, :]
    return xp[idx]                                   # (n_frames, n_fft)


def _lsd_reference(y_hat, y, n_fft, hop_length, ratio=None):
    """Pure-JAX reference replicating torch.stft-based LSD (f32 throughout)."""
    n_freq = n_fft // 2 + 1
    if ratio is not None:
        n_freq = int((n_fft // 2 + 1) * ratio)
    n = np.arange(n_fft, dtype=np.float64)
    k = np.arange(n_freq, dtype=np.float64)
    ang = 2.0 * np.pi * np.outer(n, k) / n_fft
    cos_m = jnp.asarray(np.cos(ang), jnp.float32)
    sin_m = jnp.asarray(-np.sin(ang), jnp.float32)
    window = jnp.asarray(0.5 - 0.5 * np.cos(2.0 * np.pi * n / n_fft), jnp.float32)

    def spec(x):
        fr = _frame_signal_gather(x.astype(jnp.float32), n_fft, hop_length) * window[None, :]
        re = fr @ cos_m
        im = fr @ sin_m
        return jnp.log10(jnp.maximum(re * re + im * im, 1e-8))

    sp = spec(y_hat)
    st = spec(y)
    return jnp.mean(jnp.sqrt(jnp.mean((sp - st) ** 2, axis=-1)))


if __name__ == "__main__":
    # Small-but-consistent config: n_fft=256, hop=64, signal length 960 -> 16 frames,
    # so the grid has 2 steps (frame_tile=8) and exercises the pipelined path.
    n_fft, hop = 256, 64
    T = 960
    key = jax.random.PRNGKey(0)
    k1, k2 = jax.random.split(key)
    y_hat = jax.random.normal(k1, (T,), dtype=jnp.float32)
    y = jax.random.normal(k2, (T,), dtype=jnp.float32)

    ref = jax.block_until_ready(_lsd_reference(y_hat, y, n_fft, hop))

    # f32 compute path: tight check against the pure-JAX reference (validation-only path).
    out_f32 = jax.block_until_ready(
        lsd_pallas(y_hat, y, n_fft=n_fft, hop_length=hop, compute_dtype=jnp.float32))
    np.testing.assert_allclose(np.asarray(out_f32), np.asarray(ref), rtol=1e-4, atol=1e-4)

    # Default (bf16 matmul inputs, f32 accumulation) production path: looser tolerance.
    out_bf16 = jax.block_until_ready(lsd_pallas(y_hat, y, n_fft=n_fft, hop_length=hop))
    np.testing.assert_allclose(np.asarray(out_bf16), np.asarray(ref), rtol=1e-2, atol=1e-2)

    print("KERNEL_OK")
</pallas_src>

<mosaic_0001>
module attributes {stable_mosaic.version = 11 : i64} {
  func.func @_lsd_kernel(%arg0: i32, %arg1: memref<2x8x256xf32, #tpu.memory_space<vmem>>, %arg2: memref<256x512xf32, #tpu.memory_space<vmem>>, %arg3: memref<8x1xf32, #tpu.memory_space<vmem>>) attributes {dimension_semantics = [#tpu.dimension_semantics<parallel>], iteration_bounds = array<i64: 2>, scalar_prefetch = 0 : i64, scratch_operands = 0 : i64, tpu.core_type = #tpu.core_type<tc>, window_params = [{transform_indices = @transform_0, window_bounds = array<i64: 2, 8, 256>}, {pipeline_mode = #tpu.pipeline_mode<synchronous>, transform_indices = @transform_1, window_bounds = array<i64: 256, 512>}, {transform_indices = @transform_2, window_bounds = array<i64: 8, 1>}]} {
    %c0 = arith.constant 0 : index
    %c0_0 = arith.constant 0 : index
    %c0_1 = arith.constant 0 : index
    %0 = vector.load %arg1[%c0, %c0_0, %c0_1] : memref<2x8x256xf32, #tpu.memory_space<vmem>>, vector<2x8x256xf32>
    %1 = vector.shape_cast %0 : vector<2x8x256xf32> to vector<16x256xf32>
    %c0_2 = arith.constant 0 : index
    %c0_3 = arith.constant 0 : index
    %2 = vector.load %arg2[%c0_2, %c0_3] : memref<256x512xf32, #tpu.memory_space<vmem>>, vector<256x512xf32>
    %cst = arith.constant dense<0.000000e+00> : vector<16x512xf32>
    %3 = tpu.matmul %1, %2, %cst {dimension_numbers = #tpu.dot_dimension_numbers<[1], [0], [0], [1], [0, 0, 1, 1], [], []>} : vector<16x256xf32>, vector<256x512xf32>, vector<16x512xf32> -> vector<16x512xf32>
    %4 = vector.extract_strided_slice %3 {offsets = [0, 0], sizes = [16, 256], strides = [1, 1]} : vector<16x512xf32> to vector<16x256xf32>
    %5 = vector.extract_strided_slice %3 {offsets = [0, 256], sizes = [16, 256], strides = [1, 1]} : vector<16x512xf32> to vector<16x256xf32>
    %6 = arith.mulf %4, %4 : vector<16x256xf32>
    %7 = arith.mulf %5, %5 : vector<16x256xf32>
    %8 = arith.addf %6, %7 : vector<16x256xf32>
    %cst_4 = arith.constant 9.99999993E-9 : f32
    %9 = vector.broadcast %cst_4 : f32 to vector<16x256xf32>
    %10 = arith.maximumf %8, %9 : vector<16x256xf32>
    %11 = vector.extract_strided_slice %10 {offsets = [0, 0], sizes = [8, 256], strides = [1, 1]} : vector<16x256xf32> to vector<8x256xf32>
    %12 = vector.extract_strided_slice %10 {offsets = [8, 0], sizes = [8, 256], strides = [1, 1]} : vector<16x256xf32> to vector<8x256xf32>
    %13 = arith.divf %11, %12 : vector<8x256xf32>
    %14 = math.log %13 : vector<8x256xf32>
    %cst_5 = arith.constant 0.434294492 : f32
    %15 = vector.broadcast %cst_5 : f32 to vector<8x256xf32>
    %16 = arith.mulf %14, %15 : vector<8x256xf32>
    %17 = arith.mulf %16, %16 : vector<8x256xf32>
    %cst_6 = arith.constant dense<0.000000e+00> : vector<8xf32>
    %18 = vector.multi_reduction <add>, %17, %cst_6 [1] : vector<8x256xf32> to vector<8xf32>
    %19 = vector.shape_cast %18 : vector<8xf32> to vector<8x1xf32>
    %cst_7 = arith.constant 0.00775193795 : f32
    %20 = vector.broadcast %cst_7 : f32 to vector<8x1xf32>
    %21 = arith.mulf %19, %20 : vector<8x1xf32>
    %22 = math.sqrt %21 : vector<8x1xf32>
    %c0_8 = arith.constant 0 : index
    %c0_9 = arith.constant 0 : index
    %23 = vector.load %arg3[%c0_8, %c0_9] : memref<8x1xf32, #tpu.memory_space<vmem>>, vector<8x1xf32>
    tpu.vector_store %arg3[%c0_8, %c0_9], %22 {strides = array<i32>} : memref<8x1xf32, #tpu.memory_space<vmem>>, vector<8x1xf32>,
    return
  }
  func.func @transform_0(%arg0: i32) -> (i32, i32, i32) {
    %c0_i32 = arith.constant 0 : i32
    %c0_i32_0 = arith.constant 0 : i32
    %c0_i32_1 = arith.constant 0 : i32
    return %c0_i32, %arg0, %c0_i32_0 : i32, i32, i32
  }
  func.func @transform_1(%arg0: i32) -> (i32, i32) {
    %c0_i32 = arith.constant 0 : i32
    %c0_i32_0 = arith.constant 0 : i32
    %c0_i32_1 = arith.constant 0 : i32
    return %c0_i32, %c0_i32_0 : i32, i32
  }
  func.func @transform_2(%arg0: i32) -> (i32, i32) {
    %c0_i32 = arith.constant 0 : i32
    %c0_i32_0 = arith.constant 0 : i32
    return %arg0, %c0_i32 : i32, i32
  }
}

</mosaic_0001>

<llo_original>
// kernel: tpu_custom_call.1
$region0: #{tpu_custom_call.1}
  #allocation0 [shape = 'u32[]', space=smem, size = 0x4, offset = 0x4, fixed_abs, tag = 'smem constant byte address 0x4 - core index']
  #allocation1 [shape = 'u32[144,128]{1,0:T(1,128)}', space=vmem, size = 0x12000, scoped, tag = 'internal scratch']
  %s0 = inlined_call_operand.hbm [shape: f32[2,16,256], index: 0, kind: input, shape index: {}]
  %s1 = inlined_call_operand.hbm [shape: f32[256,512], index: 1, kind: input, shape index: {}]
  %s2 = inlined_call_operand.vmem [shape: f32[16,1], index: 2, kind: output, shape index: {}]
  %s3 = sld [smem:[#allocation0]]
  $region49: #{tpu_custom_call.1} parent=0
    _
  %s5 = ssub.s32 1, %s3
  %s6 = scalar_select 0, %s5, %s3
  $region1: #{tpu_custom_call.1} parent=0
    #allocation2 [shape = 'u8[32768]{0}', space=vmem, size = 0x8000, scoped, tag = 'input window, operand 0']
    #allocation3 [shape = 's32[2]{0}', space=sflag, size = 0x8, scoped, tag = 'scoped memory for tpu_custom_call.1']
    #allocation4 [shape = 'u8[524288]{0}', space=vmem, size = 0x80000, scoped, tag = 'input window, operand 1, single buffered']
    #allocation5 [shape = 's32[1]{0}', space=sflag, size = 0x4, scoped, tag = 'scoped memory for tpu_custom_call.1']
    %7 = vsyncpa [#allocation3], 0
    %s8 = scalar_lea.sflag [#allocation3], 1
    %9 = vsyncpa %s8, 0
    %10 = vsyncpa [#allocation5], 0
    loop: start=0, step=1, limit=4
    $region2: #{tpu_custom_call.1} parent=1 // loop_pre_header
      _
    $region3: #{tpu_custom_call.1} parent=1 // loop_header
      %s12 = sphi 0, %s16
      %p13 = scmp.ge.s32.totalorder %s12, 4
      %s22 = sphi 0, %s24
      %s25 = sphi 0, %s22
      %s26 = sphi 0, %s25
      %s42 = sphi 0, %s26
      %s46 = sphi 0, %s46
      %s48 = sphi 0, %s46
      %s49 = sphi 0, %s48
      %s63 = sphi 0, %s49
      %s69 = sphi 0, %s71
      %s72 = sphi 0, %s69
      %s73 = sphi 0, %s72
      %s89 = sphi 0, %s73
    $region4: #{tpu_custom_call.1} parent=1 // loop_header_branch
      %15 = sbr.rel (%p13) target = $region8
    $region5: #{tpu_custom_call.1} parent=1 // loop_body
      %s17 = ssub.s32 %s12, 1
      %s18 = ssub.s32 %s12, 2
      %s19 = sadd.s32 %s12, 1
      %s20 = ssub.s32 %s12, %s19
      %p21 = scmp.eq.s32.totalorder %s20, 0
      %s23 = sadd.s32 %s22, 1
      %s24 = scalar_select %p21, %s22, %s23
      %p27 = pneg %p21
      %p28 = scmp.eq.s32.totalorder %s12, 1
      %p29 = por %p27, %p28
      %p30 = scmp.ne.s32.totalorder %s22, %s25
      %p31 = scmp.eq.s32.totalorder %s12, 0
      %p32 = por %p30, %p31
      %p33 = scmp.ne.s32.totalorder %s22, %s25
      %p34 = scmp.eq.s32.totalorder %s17, 1
      %p35 = por %p33, %p34
      %p36 = scmp.ne.s32.totalorder %s25, %s26
      %p37 = scmp.eq.s32.totalorder %s17, 0
      %p38 = por %p36, %p37
      %p39 = scmp.ne.s32.totalorder %s25, %s26
      %p40 = scmp.eq.s32.totalorder %s18, 1
      %p41 = por %p39, %p40
      %p43 = scmp.ne.s32.totalorder %s26, %s42
      %p44 = scmp.eq.s32.totalorder %s18, 0
      %p45 = por %p43, %p44
      %s47 = sadd.s32 %s46, 1
      %p50 = scmp.eq.s32.totalorder %s12, 1
      %p51 = scmp.ne.s32.totalorder %s46, %s48
      %p52 = scmp.eq.s32.totalorder %s12, 0
      %p53 = por %p51, %p52
      %p54 = scmp.ne.s32.totalorder %s46, %s48
      %p55 = scmp.eq.s32.totalorder %s17, 1
      %p56 = por %p54, %p55
      %p57 = scmp.ne.s32.totalorder %s48, %s49
      %p58 = scmp.eq.s32.totalorder %s17, 0
      %p59 = por %p57, %p58
      %p60 = scmp.ne.s32.totalorder %s48, %s49
      %p61 = scmp.eq.s32.totalorder %s18, 1
      %p62 = por %p60, %p61
      %p64 = scmp.ne.s32.totalorder %s49, %s63
      %p65 = scmp.eq.s32.totalorder %s18, 0
      %p66 = por %p64, %p65
      %s67 = ssub.s32 %s12, %s19
      %p68 = scmp.eq.s32.totalorder %s67, 0
      %s70 = sadd.s32 %s69, 1
      %s71 = scalar_select %p68, %s69, %s70
      %p74 = pneg %p68
      %p75 = scmp.eq.s32.totalorder %s12, 1
      %p76 = por %p74, %p75
      %p77 = scmp.ne.s32.totalorder %s69, %s72
      %p78 = scmp.eq.s32.totalorder %s12, 0
      %p79 = por %p77, %p78
      %p80 = scmp.ne.s32.totalorder %s69, %s72
      %p81 = scmp.eq.s32.totalorder %s17, 1
      %p82 = por %p80, %p81
      %p83 = scmp.ne.s32.totalorder %s72, %s73
      %p84 = scmp.eq.s32.totalorder %s17, 0
      %p85 = por %p83, %p84
      %p86 = scmp.ne.s32.totalorder %s72, %s73
      %p87 = scmp.eq.s32.totalorder %s18, 1
      %p88 = por %p86, %p87
      %p90 = scmp.ne.s32.totalorder %s73, %s89
      %p91 = scmp.eq.s32.totalorder %s18, 0
      %p92 = por %p90, %p91
      %p93 = scmp.le.s32.totalorder 1, %s12
      %p94 = scmp.lt.s32.totalorder %s12, 3
      %p95 = pnand %p93, %p94
      %p96 = pneg %p95
      // Predicated region
      $region9: #{tpu_custom_call.1} parent=5 // pred_check
        _
      $region10: #{tpu_custom_call.1} parent=5 // pred_check_branch
        %98 = sbr.rel (%p95) target = $region12
      $region11: #{tpu_custom_call.1} parent=5 // pred_region
        %s99 = ssub.s32 %s12, 1
        // Predicated region
        $region13: #{tpu_custom_call.1} parent=11 // pred_check
          %p100 = pneg %p59
        $region14: #{tpu_custom_call.1} parent=11 // pred_check_branch
          %102 = sbr.rel (%p100) target = $region16
        $region15: #{tpu_custom_call.1} parent=11 // pred_region
          %s104 = ssub.s32 16384, 16384
          %105 = vsyncadd [#allocation5], %s104
          %s106 = sshll.u32 [#allocation4], 4
          %s107 = int_to_ptr.vmem [resolvable:$true] %s106
          %112 = dma.hbm_to_vmem [thread:$0]  %s1, 16384, %s107, [#allocation5], 512, 512, 32
        $region16: #{tpu_custom_call.1} parent=11 // pred_fallthru
          _
      $region12: #{tpu_custom_call.1} parent=5 // pred_fallthru
        _
      %p113 = scmp.lt.s32.totalorder %s12, 2
      // Predicated region
      $region17: #{tpu_custom_call.1} parent=5 // pred_check
        %p114 = pneg %p113
      $region18: #{tpu_custom_call.1} parent=5 // pred_check_branch
        %116 = sbr.rel (%p114) target = $region20
      $region19: #{tpu_custom_call.1} parent=5 // pred_region
        // Predicated region
        $region21: #{tpu_custom_call.1} parent=19 // pred_check
          %p117 = pneg %p32
        $region22: #{tpu_custom_call.1} parent=19 // pred_check_branch
          %119 = sbr.rel (%p117) target = $region24
        $region23: #{tpu_custom_call.1} parent=19 // pred_region
          %s120 = sand.u32 %s22, 1
          %s121 = scalar_lea.sflag [#allocation3], %s120
          %s122 = sand.u32 %s22, 1
          %s123 = smul.addr %s122, 32
          %s124 = scalar_lea.vmem [#allocation2], %s123
          %s126 = ssub.s32 512, 512
          %127 = vsyncadd %s121, %s126
          %s128 = smul.addr %s12, 2
          %s129 = smul.addr %s128, 128
          %s130 = scalar_lea.hbm %s0, %s129
          %s131 = sshll.u32 %s124, 4
          %s132 = int_to_ptr.vmem [resolvable:$true] %s131
          %137 = dma.hbm_to_vmem [thread:$0]  %s130, 512, %s132, %s121, 512, 256, 16
        $region24: #{tpu_custom_call.1} parent=19 // pred_fallthru
          _
      $region20: #{tpu_custom_call.1} parent=5 // pred_fallthru
        _
      %p138 = scmp.le.s32.totalorder 1, %s12
      %p139 = scmp.lt.s32.totalorder %s12, 3
      %p140 = pnand %p138, %p139
      %p141 = pneg %p140
      // Predicated region
      $region25: #{tpu_custom_call.1} parent=5 // pred_check
        _
      $region26: #{tpu_custom_call.1} parent=5 // pred_check_branch
        %143 = sbr.rel (%p140) target = $region28
      $region27: #{tpu_custom_call.1} parent=5 // pred_region
        %s144 = ssub.s32 %s12, 1
        %s145 = sand.u32 %s25, 1
        %s146 = scalar_lea.sflag [#allocation3], %s145
        %s147 = sand.u32 %s25, 1
        %s148 = smul.addr %s147, 32
        %s149 = scalar_lea.vmem [#allocation2], %s148
        // Predicated region
        $region29: #{tpu_custom_call.1} parent=27 // pred_check
          %p150 = pneg %p38
        $region30: #{tpu_custom_call.1} parent=27 // pred_check_branch
          %152 = sbr.rel (%p150) target = $region32
        $region31: #{tpu_custom_call.1} parent=27 // pred_region
          %153 = dma.done %s146, 512
        $region32: #{tpu_custom_call.1} parent=27 // pred_fallthru
          _
        // Predicated region
        $region33: #{tpu_custom_call.1} parent=27 // pred_check
          %p154 = pneg %p59
        $region34: #{tpu_custom_call.1} parent=27 // pred_check_branch
          %156 = sbr.rel (%p154) target = $region36
        $region35: #{tpu_custom_call.1} parent=27 // pred_region
          %157 = dma.done [#allocation5], 16384
        $region36: #{tpu_custom_call.1} parent=27 // pred_fallthru
          _
        %s158 = sand.u32 %s25, 1
        %s159 = scalar_lea.sflag [#allocation3], %s158
        %s160 = sand.u32 %s25, 1
        %s161 = smul.addr %s160, 32
        %s162 = scalar_lea.vmem [#allocation2], %s161
        %p163 = pneg %p38
        %p164 = pneg %p35
        %p165 = pneg %p59
        %p166 = pneg %p56
        %p167 = pneg %p85
        %p168 = pneg %p82
        %p169 = scmp.lt.s32.totalorder %s17, 1
        %s170 = scalar_select %p169, %s17, 1
        %s171 = smul.addr %s170, 8
        %s172 = scalar_lea.vmem %s2, %s171
        %p173 = scmp.lt.s32.totalorder %s17, 1
        %s174 = scalar_select %p173, %s17, 1
        %s175 = smul.addr %s174, 8
        %s176 = scalar_lea.vmem %s2, %s175
        %v177 = vld [vmem:[%s149] sm:$0xff]
        %v178 = vld [vmem:[%s149 + $0x8] sm:$0xff]
        %v179 = vld [vmem:[%s149 + $0x10] sm:$0xff]
        %v180 = vld [vmem:[%s149 + $0x18] sm:$0xff]
        %v181 = vld [vmem:[#allocation4] sm:$0xff]
        %v182 = vld [vmem:[#allocation4 + $0x8] sm:$0xff]
        %v183 = vld [vmem:[#allocation4 + $0x10] sm:$0xff]
        %v184 = vld [vmem:[#allocation4 + $0x18] sm:$0xff]
        %v185 = vld [vmem:[#allocation4 + $0x20] sm:$0xff]
        %v186 = vld [vmem:[#allocation4 + $0x28] sm:$0xff]
        %v187 = vld [vmem:[#allocation4 + $0x30] sm:$0xff]
        %v188 = vld [vmem:[#allocation4 + $0x38] sm:$0xff]
        %v189 = vld [vmem:[#allocation4 + $0x40] sm:$0xff]
        %v190 = vld [vmem:[#allocation4 + $0x48] sm:$0xff]
        %v191 = vld [vmem:[#allocation4 + $0x50] sm:$0xff]
        %v192 = vld [vmem:[#allocation4 + $0x58] sm:$0xff]
        %v193 = vld [vmem:[#allocation4 + $0x60] sm:$0xff]
        %v194 = vld [vmem:[#allocation4 + $0x68] sm:$0xff]
        %v195 = vld [vmem:[#allocation4 + $0x70] sm:$0xff]
        %v196 = vld [vmem:[#allocation4 + $0x78] sm:$0xff]
        %v197 = vld [vmem:[#allocation4 + $0x80] sm:$0xff]
        %v198 = vld [vmem:[#allocation4 + $0x88] sm:$0xff]
        %v199 = vld [vmem:[#allocation4 + $0x90] sm:$0xff]
        %v200 = vld [vmem:[#allocation4 + $0x98] sm:$0xff]
        %v201 = vld [vmem:[#allocation4 + $0xa0] sm:$0xff]
        %v202 = vld [vmem:[#allocation4 + $0xa8] sm:$0xff]
        %v203 = vld [vmem:[#allocation4 + $0xb0] sm:$0xff]
        %v204 = vld [vmem:[#allocation4 + $0xb8] sm:$0xff]
        %v205 = vld [vmem:[#allocation4 + $0xc0] sm:$0xff]
        %v206 = vld [vmem:[#allocation4 + $0xc8] sm:$0xff]
        %v207 = vld [vmem:[#allocation4 + $0xd0] sm:$0xff]
        %v208 = vld [vmem:[#allocation4 + $0xd8] sm:$0xff]
        %v209 = vld [vmem:[#allocation4 + $0xe0] sm:$0xff]
        %v210 = vld [vmem:[#allocation4 + $0xe8] sm:$0xff]
        %v211 = vld [vmem:[#allocation4 + $0xf0] sm:$0xff]
        %v212 = vld [vmem:[#allocation4 + $0xf8] sm:$0xff]
        %v213 = vld [vmem:[#allocation4 + $0x100] sm:$0xff]
        %v214 = vld [vmem:[#allocation4 + $0x108] sm:$0xff]
        %v215 = vld [vmem:[#allocation4 + $0x110] sm:$0xff]
        %v216 = vld [vmem:[#allocation4 + $0x118] sm:$0xff]
        %v217 = vld [vmem:[#allocation4 + $0x120] sm:$0xff]
        %v218 = vld [vmem:[#allocation4 + $0x128] sm:$0xff]
        %v219 = vld [vmem:[#allocation4 + $0x130] sm:$0xff]
        %v220 = vld [vmem:[#allocation4 + $0x138] sm:$0xff]
        %v221 = vld [vmem:[#allocation4 + $0x140] sm:$0xff]
        %v222 = vld [vmem:[#allocation4 + $0x148] sm:$0xff]
        %v223 = vld [vmem:[#allocation4 + $0x150] sm:$0xff]
        %v224 = vld [vmem:[#allocation4 + $0x158] sm:$0xff]
        %v225 = vld [vmem:[#allocation4 + $0x160] sm:$0xff]
        %v226 = vld [vmem:[#allocation4 + $0x168] sm:$0xff]
        %v227 = vld [vmem:[#allocation4 + $0x170] sm:$0xff]
        %v228 = vld [vmem:[#allocation4 + $0x178] sm:$0xff]
        %v229 = vld [vmem:[#allocation4 + $0x180] sm:$0xff]
        %v230 = vld [vmem:[#allocation4 + $0x188] sm:$0xff]
        %v231 = vld [vmem:[#allocation4 + $0x190] sm:$0xff]
        %v232 = vld [vmem:[#allocation4 + $0x198] sm:$0xff]
        %v233 = vld [vmem:[#allocation4 + $0x1a0] sm:$0xff]
        %v234 = vld [vmem:[#allocation4 + $0x1a8] sm:$0xff]
        %v235 = vld [vmem:[#allocation4 + $0x1b0] sm:$0xff]
        %v236 = vld [vmem:[#allocation4 + $0x1b8] sm:$0xff]
        %v237 = vld [vmem:[#allocation4 + $0x1c0] sm:$0xff]
        %v238 = vld [vmem:[#allocation4 + $0x1c8] sm:$0xff]
        %v239 = vld [vmem:[#allocation4 + $0x1d0] sm:$0xff]
        %v240 = vld [vmem:[#allocation4 + $0x1d8] sm:$0xff]
        %v241 = vld [vmem:[#allocation4 + $0x1e0] sm:$0xff]
        %v242 = vld [vmem:[#allocation4 + $0x1e8] sm:$0xff]
        %v243 = vld [vmem:[#allocation4 + $0x1f0] sm:$0xff]
        %v244 = vld [vmem:[#allocation4 + $0x1f8] sm:$0xff]
        %v245 = vld [vmem:[#allocation4 + $0x200] sm:$0xff]
        %v246 = vld [vmem:[#allocation4 + $0x208] sm:$0xff]
        %v247 = vld [vmem:[#allocation4 + $0x210] sm:$0xff]
        %v248 = vld [vmem:[#allocation4 + $0x218] sm:$0xff]
        %v249 = vld [vmem:[#allocation4 + $0x220] sm:$0xff]
        %v250 = vld [vmem:[#allocation4 + $0x228] sm:$0xff]
        %v251 = vld [vmem:[#allocation4 + $0x230] sm:$0xff]
        %v252 = vld [vmem:[#allocation4 + $0x238] sm:$0xff]
        %v253 = vld [vmem:[#allocation4 + $0x240] sm:$0xff]
        %v254 = vld [vmem:[#allocation4 + $0x248] sm:$0xff]
        %v255 = vld [vmem:[#allocation4 + $0x250] sm:$0xff]
        %v256 = vld [vmem:[#allocation4 + $0x258] sm:$0xff]
        %v257 = vld [vmem:[#allocation4 + $0x260] sm:$0xff]
        %v258 = vld [vmem:[#allocation4 + $0x268] sm:$0xff]
        %v259 = vld [vmem:[#allocation4 + $0x270] sm:$0xff]
        %v260 = vld [vmem:[#allocation4 + $0x278] sm:$0xff]
        %v261 = vld [vmem:[#allocation4 + $0x280] sm:$0xff]
        %v262 = vld [vmem:[#allocation4 + $0x288] sm:$0xff]
        %v263 = vld [vmem:[#allocation4 + $0x290] sm:$0xff]
        %v264 = vld [vmem:[#allocation4 + $0x298] sm:$0xff]
        %v265 = vld [vmem:[#allocation4 + $0x2a0] sm:$0xff]
        %v266 = vld [vmem:[#allocation4 + $0x2a8] sm:$0xff]
        %v267 = vld [vmem:[#allocation4 + $0x2b0] sm:$0xff]
        %v268 = vld [vmem:[#allocation4 + $0x2b8] sm:$0xff]
        %v269 = vld [vmem:[#allocation4 + $0x2c0] sm:$0xff]
        %v270 = vld [vmem:[#allocation4 + $0x2c8] sm:$0xff]
        %v271 = vld [vmem:[#allocation4 + $0x2d0] sm:$0xff]
        %v272 = vld [vmem:[#allocation4 + $0x2d8] sm:$0xff]
        %v273 = vld [vmem:[#allocation4 + $0x2e0] sm:$0xff]
        %v274 = vld [vmem:[#allocation4 + $0x2e8] sm:$0xff]
        %v275 = vld [vmem:[#allocation4 + $0x2f0] sm:$0xff]
        %v276 = vld [vmem:[#allocation4 + $0x2f8] sm:$0xff]
        %v277 = vld [vmem:[#allocation4 + $0x300] sm:$0xff]
        %v278 = vld [vmem:[#allocation4 + $0x308] sm:$0xff]
        %v279 = vld [vmem:[#allocation4 + $0x310] sm:$0xff]
        %v280 = vld [vmem:[#allocation4 + $0x318] sm:$0xff]
        %v281 = vld [vmem:[#allocation4 + $0x320] sm:$0xff]
        %v282 = vld [vmem:[#allocation4 + $0x328] sm:$0xff]
        %v283 = vld [vmem:[#allocation4 + $0x330] sm:$0xff]
        %v284 = vld [vmem:[#allocation4 + $0x338] sm:$0xff]
        %v285 = vld [vmem:[#allocation4 + $0x340] sm:$0xff]
        %v286 = vld [vmem:[#allocation4 + $0x348] sm:$0xff]
        %v287 = vld [vmem:[#allocation4 + $0x350] sm:$0xff]
        %v288 = vld [vmem:[#allocation4 + $0x358] sm:$0xff]
        %v289 = vld [vmem:[#allocation4 + $0x360] sm:$0xff]
        %v290 = vld [vmem:[#allocation4 + $0x368] sm:$0xff]
        %v291 = vld [vmem:[#allocation4 + $0x370] sm:$0xff]
        %v292 = vld [vmem:[#allocation4 + $0x378] sm:$0xff]
        %v293 = vld [vmem:[#allocation4 + $0x380] sm:$0xff]
        %v294 = vld [vmem:[#allocation4 + $0x388] sm:$0xff]
        %v295 = vld [vmem:[#allocation4 + $0x390] sm:$0xff]
        %v296 = vld [vmem:[#allocation4 + $0x398] sm:$0xff]
        %v297 = vld [vmem:[#allocation4 + $0x3a0] sm:$0xff]
        %v298 = vld [vmem:[#allocation4 + $0x3a8] sm:$0xff]
        %v299 = vld [vmem:[#allocation4 + $0x3b0] sm:$0xff]
        %v300 = vld [vmem:[#allocation4 + $0x3b8] sm:$0xff]
        %v301 = vld [vmem:[#allocation4 + $0x3c0] sm:$0xff]
        %v302 = vld [vmem:[#allocation4 + $0x3c8] sm:$0xff]
        %v303 = vld [vmem:[#allocation4 + $0x3d0] sm:$0xff]
        %v304 = vld [vmem:[#allocation4 + $0x3d8] sm:$0xff]
        %v305 = vld [vmem:[#allocation4 + $0x3e0] sm:$0xff]
        %v306 = vld [vmem:[#allocation4 + $0x3e8] sm:$0xff]
        %v307 = vld [vmem:[#allocation4 + $0x3f0] sm:$0xff]
        %v308 = vld [vmem:[#allocation4 + $0x3f8] sm:$0xff]
        %309 = vmatprep.subr.mxu0 %v182
        %310 = vmatpush1.msra.mxu0 %v181
        %311 = vmatprep.subr.mxu0 %v186
        %312 = vmatpush1.msra.mxu0 %v185
        %313 = vmatprep.subr.mxu0 %v190
        %314 = vmatpush1.msra.mxu0 %v189
        %315 = vmatprep.subr.mxu0 %v194
        %316 = vmatpush1.msra.mxu0 %v193
        %317 = vmatprep.subr.mxu0 %v198
        %318 = vmatpush1.msra.mxu0 %v197
        %319 = vmatprep.subr.mxu0 %v202
        %320 = vmatpush1.msra.mxu0 %v201
        %321 = vmatprep.subr.mxu0 %v206
        %322 = vmatpush1.msra.mxu0 %v205
        %323 = vmatprep.subr.mxu0 %v210
        %324 = vmatpush1.msra.mxu0 %v209
        %325 = vmatprep.subr.mxu0 %v214
        %326 = vmatpush1.msra.mxu0 %v213
        %327 = vmatprep.subr.mxu0 %v218
        %328 = vmatpush1.msra.mxu0 %v217
        %329 = vmatprep.subr.mxu0 %v222
        %330 = vmatpush1.msra.mxu0 %v221
        %331 = vmatprep.subr.mxu0 %v226
        %332 = vmatpush1.msra.mxu0 %v225
        %333 = vmatprep.subr.mxu0 %v230
        %334 = vmatpush1.msra.mxu0 %v229
        %335 = vmatprep.subr.mxu0 %v234
        %336 = vmatpush1.msra.mxu0 %v233
        %337 = vmatprep.subr.mxu0 %v238
        %338 = vmatpush1.msra.mxu0 %v237
        %339 = vmatprep.subr.mxu0 %v242
        %340 = vmatpush1.msra.mxu0 %v241
        %341 = vmatprep.subr.mxu0 %v246
        %342 = vmatpush1.msra.mxu0 %v245
        %343 = vmatprep.subr.mxu0 %v250
        %344 = vmatpush1.msra.mxu0 %v249
        %345 = vmatprep.subr.mxu0 %v254
        %346 = vmatpush1.msra.mxu0 %v253
        %347 = vmatprep.subr.mxu0 %v258
        %348 = vmatpush1.msra.mxu0 %v257
        %349 = vmatprep.subr.mxu0 %v262
        %350 = vmatpush1.msra.mxu0 %v261
        %351 = vmatprep.subr.mxu0 %v266
        %352 = vmatpush1.msra.mxu0 %v265
        %353 = vmatprep.subr.mxu0 %v270
        %354 = vmatpush1.msra.mxu0 %v269
        %355 = vmatprep.subr.mxu0 %v274
        %356 = vmatpush1.msra.mxu0 %v273
        %357 = vmatprep.subr.mxu0 %v278
        %358 = vmatpush1.msra.mxu0 %v277
        %359 = vmatprep.subr.mxu0 %v282
        %360 = vmatpush1.msra.mxu0 %v281
        %361 = vmatprep.subr.mxu0 %v286
        %362 = vmatpush1.msra.mxu0 %v285
        %363 = vmatprep.subr.mxu0 %v290
        %364 = vmatpush1.msra.mxu0 %v289
        %365 = vmatprep.subr.mxu0 %v294
        %366 = vmatpush1.msra.mxu0 %v293
        %367 = vmatprep.subr.mxu0 %v298
        %368 = vmatpush1.msra.mxu0 %v297
        %369 = vmatprep.subr.mxu0 %v302
        %370 = vmatpush1.msra.mxu0 %v301
        %371 = vmatprep.subr.mxu0 %v306
        %372 = vmatpush1.msra.mxu0 %v305
        %373 = vmatprep.mubr.f32.mxu0 %v178
        %374 = vmatmul.mubr.f32.gmra.mrb[0].mxu0 %v177
        %v375 = vpop.f32.mrb[0].mxu0
        %v376 = vadd.f32 0.0, %v375
        %v377 = vpop.f32.mrb[0].mxu0
        %v378 = vadd.f32 0.0, %v377
        %379 = vmatprep.mubr.f32.mxu0 %v180
        %380 = vmatmul.mubr.f32.gmra.mrb[0].mxu0 %v179
        %v381 = vpop.f32.mrb[0].mxu0
        %v382 = vadd.f32 0.0, %v381
        %v383 = vpop.f32.mrb[0].mxu0
        %v384 = vadd.f32 0.0, %v383
        %385 = vdwg.mxu0
        %386 = vmatprep.subr.mxu0 %v184
        %387 = vmatpush1.msra.mxu0 %v183
        %388 = vmatprep.subr.mxu0 %v188
        %389 = vmatpush1.msra.mxu0 %v187
        %390 = vmatprep.subr.mxu0 %v192
        %391 = vmatpush1.msra.mxu0 %v191
        %392 = vmatprep.subr.mxu0 %v196
        %393 = vmatpush1.msra.mxu0 %v195
        %394 = vmatprep.subr.mxu0 %v200
        %395 = vmatpush1.msra.mxu0 %v199
        %396 = vmatprep.subr.mxu0 %v204
        %397 = vmatpush1.msra.mxu0 %v203
        %398 = vmatprep.subr.mxu0 %v208
        %399 = vmatpush1.msra.mxu0 %v207
        %400 = vmatprep.subr.mxu0 %v212
        %401 = vmatpush1.msra.mxu0 %v211
        %402 = vmatprep.subr.mxu0 %v216
        %403 = vmatpush1.msra.mxu0 %v215
        %404 = vmatprep.subr.mxu0 %v220
        %405 = vmatpush1.msra.mxu0 %v219
        %406 = vmatprep.subr.mxu0 %v224
        %407 = vmatpush1.msra.mxu0 %v223
        %408 = vmatprep.subr.mxu0 %v228
        %409 = vmatpush1.msra.mxu0 %v227
        %410 = vmatprep.subr.mxu0 %v232
        %411 = vmatpush1.msra.mxu0 %v231
        %412 = vmatprep.subr.mxu0 %v236
        %413 = vmatpush1.msra.mxu0 %v235
        %414 = vmatprep.subr.mxu0 %v240
        %415 = vmatpush1.msra.mxu0 %v239
        %416 = vmatprep.subr.mxu0 %v244
        %417 = vmatpush1.msra.mxu0 %v243
        %418 = vmatprep.subr.mxu0 %v248
        %419 = vmatpush1.msra.mxu0 %v247
        %420 = vmatprep.subr.mxu0 %v252
        %421 = vmatpush1.msra.mxu0 %v251
        %422 = vmatprep.subr.mxu0 %v256
        %423 = vmatpush1.msra.mxu0 %v255
        %424 = vmatprep.subr.mxu0 %v260
        %425 = vmatpush1.msra.mxu0 %v259
        %426 = vmatprep.subr.mxu0 %v264
        %427 = vmatpush1.msra.mxu0 %v263
        %428 = vmatprep.subr.mxu0 %v268
        %429 = vmatpush1.msra.mxu0 %v267
        %430 = vmatprep.subr.mxu0 %v272
        %431 = vmatpush1.msra.mxu0 %v271
        %432 = vmatprep.subr.mxu0 %v276
        %433 = vmatpush1.msra.mxu0 %v275
        %434 = vmatprep.subr.mxu0 %v280
        %435 = vmatpush1.msra.mxu0 %v279
        %436 = vmatprep.subr.mxu0 %v284
        %437 = vmatpush1.msra.mxu0 %v283
        %438 = vmatprep.subr.mxu0 %v288
        %439 = vmatpush1.msra.mxu0 %v287
        %440 = vmatprep.subr.mxu0 %v292
        %441 = vmatpush1.msra.mxu0 %v291
        %442 = vmatprep.subr.mxu0 %v296
        %443 = vmatpush1.msra.mxu0 %v295
        %444 = vmatprep.subr.mxu0 %v300
        %445 = vmatpush1.msra.mxu0 %v299
        %446 = vmatprep.subr.mxu0 %v304
        %447 = vmatpush1.msra.mxu0 %v303
        %448 = vmatprep.subr.mxu0 %v308
        %449 = vmatpush1.msra.mxu0 %v307
        %450 = vmatprep.mubr.f32.mxu0 %v178
        %451 = vmatmul.mubr.f32.gmra.mrb[0].mxu0 %v177
        %v452 = vpop.f32.mrb[0].mxu0
        %v453 = vadd.f32 0.0, %v452
        %v454 = vpop.f32.mrb[0].mxu0
        %v455 = vadd.f32 0.0, %v454
        %456 = vmatprep.mubr.f32.mxu0 %v180
        %457 = vmatmul.mubr.f32.gmra.mrb[0].mxu0 %v179
        %v458 = vpop.f32.mrb[0].mxu0
        %v459 = vadd.f32 0.0, %v458
        %v460 = vpop.f32.mrb[0].mxu0
        %v461 = vadd.f32 0.0, %v460
        %462 = vdwg.mxu0
        %v463 = vmul.f32 %v376, %v376
        %v464 = vmul.f32 %v378, %v378
        %v465 = vmul.f32 %v382, %v382
        %v466 = vmul.f32 %v384, %v384
        %v467 = vmul.f32 %v453, %v453
        %v468 = vmul.f32 %v455, %v455
        %v469 = vmul.f32 %v459, %v459
        %v470 = vmul.f32 %v461, %v461
        %v471 = vadd.f32 %v463, %v467
        %v472 = vadd.f32 %v464, %v468
        %v473 = vadd.f32 %v465, %v469
        %v474 = vadd.f32 %v466, %v470
        %v475 = vmax.f32 %v471, 1e-08
        %v476 = vmax.f32 %v472, 1e-08
        %v477 = vmax.f32 %v473, 1e-08
        %v478 = vmax.f32 %v474, 1e-08
        %v479 = vrcp.pop %v477
        %v480 = vmul.f32 %v475, %v479
        %v481 = vrcp.pop %v478
        %v482 = vmul.f32 %v476, %v481
        %v483 = vlog2.pop %v480
        %v484 = vmul.f32 %v483, 0.6931472
        %v485 = vlog2.pop %v482
        %v486 = vmul.f32 %v485, 0.6931472
        %v487 = vmul.f32 %v484, 0.4342945
        %v488 = vmul.f32 %v486, 0.4342945
        %v489 = vmul.f32 %v487, %v487
        %v490 = vmul.f32 %v488, %v488
        %v491 = vadd.f32 %v489, %v490
        %492 = vadd.xlane.f32.xlu0 %v491
        %v493 = vpop.xlane.xlu0 %492
        %v494 = vmul.f32 %v493, 0.007751938
        %v495 = vrsqrt.pop %v494
        %v496 = vmul.f32 %v494, %v495
        %vm497 = vcmp.eq.f32.partialorder %v494, inf
        %v498 = vsel %vm497, %v494, %v496
        %vm499 = vcmp.eq.f32.partialorder %v494, 0.0
        %v500 = vand.u32 %v494, 2147483648
        %v501 = vsel %vm499, %v500, %v498
        %vm502 = vcmask 7168
        %503 = vst.msk [vmem:[%s176] sm:$0xff] %vm502, %v501
        %p504 = scmp.lt.s32.totalorder %s17, 1
        %s505 = scalar_select %p504, %s17, 1
        %s506 = smul.addr %s505, 8
        %s507 = scalar_lea.vmem %s2, %s506
        // Predicated region
        $region37: #{tpu_custom_call.1} parent=27 // pred_check
          %p508 = pneg %p82
        $region38: #{tpu_custom_call.1} parent=27 // pred_check_branch
          %510 = sbr.rel (%p508) target = $region40
        $region39: #{tpu_custom_call.1} parent=27 // pred_region
          _
        $region40: #{tpu_custom_call.1} parent=27 // pred_fallthru
          _
      $region28: #{tpu_custom_call.1} parent=5 // pred_fallthru
        _
      %p511 = scmp.le.s32.totalorder 2, %s12
      // Predicated region
      $region41: #{tpu_custom_call.1} parent=5 // pred_check
        %p512 = pneg %p511
      $region42: #{tpu_custom_call.1} parent=5 // pred_check_branch
        %514 = sbr.rel (%p512) target = $region44
      $region43: #{tpu_custom_call.1} parent=5 // pred_region
        %s515 = ssub.s32 %s12, 2
        // Predicated region
        $region45: #{tpu_custom_call.1} parent=43 // pred_check
          %p516 = pneg %p88
        $region46: #{tpu_custom_call.1} parent=43 // pred_check_branch
          %518 = sbr.rel (%p516) target = $region48
        $region47: #{tpu_custom_call.1} parent=43 // pred_region
          %p519 = scmp.lt.s32.totalorder %s18, 1
          %s520 = scalar_select %p519, %s18, 1
          %s521 = smul.addr %s520, 8
          %s522 = scalar_lea.vmem %s2, %s521
        $region48: #{tpu_custom_call.1} parent=43 // pred_fallthru
          _
      $region44: #{tpu_custom_call.1} parent=5 // pred_fallthru
        _
    $region6: #{tpu_custom_call.1} parent=1 // loop_footer
      %s16 = sadd.s32 1, %s12
    $region7: #{tpu_custom_call.1} parent=1 // loop_footer_branch
      %11 = sbr.rel target = $region3
    $region8: #{tpu_custom_call.1} parent=1 // loop_exit
      _
    %523 = vsyncpa [#allocation3], 1
    %s524 = scalar_lea.sflag [#allocation3], 1
    %525 = vsyncpa %s524, 1
    %526 = vsyncpa [#allocation5], 1

</llo_original>
